<compile_context>
chip_gen: v6e
topology: v6e:2x2x1
jax: 0.10.0
libtpu: 0.0.40
codegen_flags: <defaults>
</compile_context>

<pallas_src>
import functools

import jax
import jax.numpy as jnp
from jax import lax
from jax.experimental import pallas as pl
from jax.experimental.pallas import tpu as pltpu


def _round_up(a, b):
    return (a + b - 1) // b * b


def _encoder3_kernel(n_layers, ref_pad, x_dim, *refs):
    """Streams one lane-dense row tile; accumulates g = x^T h and colsum(x) in out refs."""
    slab_ref = refs[0]                       # (ref_pad + x_dim, TILE_N)
    params = refs[1:1 + 2 * n_layers]        # W0p, b0, ..., W_{L-1}, b_{L-1}
    g_out = refs[-2]                         # (1, x_dim, h_width)  VMEM-resident accumulator
    xsum_out = refs[-1]                      # (1, x_dim, 1)        VMEM-resident accumulator

    i = pl.program_id(1)

    # Output block indices are constant over the row-scan axis, so both outputs stay
    # resident in VMEM across it; HBM writeback only happens when the split changes /
    # at the end of the grid (deferred-writeback accumulator pattern).
    @pl.when(i == 0)
    def _init():
        g_out[...] = jnp.zeros_like(g_out)
        xsum_out[...] = jnp.zeros_like(xsum_out)

    # Lane-dense slab: rows [0:ref_pad] = x_ref^T (zero-padded rows), rows [ref_pad:] = x^T.
    xr_t = slab_ref[0:ref_pad, :].astype(jnp.float32)                # (ref_pad, T)
    x_t = slab_ref[ref_pad:ref_pad + x_dim, :].astype(jnp.float32)   # (x_dim, T)

    # ---- BaseNet hidden MLP on this row tile (x_scale pre-folded into W0) -----------
    # One small (ref_pad, T) -> (T, ref_pad) relayout; padded columns hit zero W0 rows.
    h = jnp.transpose(xr_t)                                          # (T, ref_pad)
    for l in range(n_layers):
        w = params[2 * l][...].astype(jnp.float32)
        b = params[2 * l + 1][...].astype(jnp.float32)               # (1, width)
        h = jnp.maximum(jnp.dot(h, w, preferred_element_type=jnp.float32) + b, 0.0)

    # ---- accumulate g += x^T @ h (natural MXU A@B, K = TILE_N) and column-sum of x --
    g_out[0] += jnp.dot(x_t, h, preferred_element_type=jnp.float32)
    xsum_out[0] += jnp.sum(x_t, axis=1, keepdims=True)


def encoder3_forward(x, x_ref, params, *, x_dim, y_dim, n_layers, x_scale,
                     tile_n=None, tile_cap=2048, num_row_splits=1,
                     core_parallel=False):
    """params: flat list [W0, b0, ..., W_out, b_out]; W_l is (in, out), b_l is (1, out).

    num_row_splits / core_parallel: set (2, True) on v7x to shard the row scan across
    both TensorCores; leave (1, False) on single-TC chips (v5e / v6e).
    """
    n = x.shape[0]
    ref_dim = x_ref.shape[1]
    assert n_layers >= 1, "BaseNet with no hidden layer is not supported by this kernel"

    # ---- host-side (trace-time) parameter prep ------------------------------------
    ref_pad = _round_up(ref_dim, 8)
    w0 = params[0] * jnp.float32(x_scale)                       # fold x_scale into W0
    w0 = jnp.pad(w0, ((0, ref_pad - ref_dim), (0, 0)))          # zero rows for padded cols
    kern_params = [w0, params[1]]
    for l in range(1, n_layers):
        kern_params.extend([params[2 * l], params[2 * l + 1]])
    w_out = params[2 * n_layers]                                # (h_width, x_dim*y_dim)
    b_out = params[2 * n_layers + 1]                            # (1, x_dim*y_dim)
    h_width = w_out.shape[0]

    # ---- row tiling: balanced tiles per split, bounded zero padding ----------------
    splits = max(1, num_row_splits)
    rows_per_split = pl.cdiv(n, splits)
    if tile_n is None:
        tiles = max(1, pl.cdiv(rows_per_split, tile_cap))
        tile_n = _round_up(pl.cdiv(rows_per_split, tiles), 128)
    else:
        tile_n = _round_up(tile_n, 128)
        tiles = max(1, pl.cdiv(rows_per_split, tile_n))
    padded_n = splits * tiles * tile_n

    # ---- single lane-dense streamed slab (N on the 128-lane axis) ------------------
    xr_t = jnp.pad(x_ref.astype(jnp.float32).T,
                   ((0, ref_pad - ref_dim), (0, padded_n - n)))      # (ref_pad, padded_n)
    x_t = jnp.pad(x.astype(jnp.float32).T,
                  ((0, 0), (0, padded_n - n)))                       # (x_dim, padded_n)
    slab = jnp.concatenate([xr_t, x_t], axis=0)                      # (ref_pad+x_dim, padded_n)
    slab_rows = ref_pad + x_dim

    kernel = functools.partial(_encoder3_kernel, n_layers, ref_pad, x_dim)

    def row_map(c, i, _tiles=tiles):
        return (0, c * _tiles + i)

    in_specs = [pl.BlockSpec((slab_rows, tile_n), row_map)]
    for p in kern_params:       # weights stay VMEM-resident (constant block index)
        in_specs.append(pl.BlockSpec(p.shape, lambda c, i: (0, 0)))

    sem0 = pltpu.CORE_PARALLEL if (core_parallel and splits > 1) else pltpu.PARALLEL
    g_part, xsum_part = pl.pallas_call(
        kernel,
        out_shape=(jax.ShapeDtypeStruct((splits, x_dim, h_width), jnp.float32),
                   jax.ShapeDtypeStruct((splits, x_dim, 1), jnp.float32)),
        grid_spec=pltpu.PrefetchScalarGridSpec(
            num_scalar_prefetch=0,
            grid=(splits, tiles),
            in_specs=in_specs,
            out_specs=[pl.BlockSpec((1, x_dim, h_width), lambda c, i: (c, 0, 0)),
                       pl.BlockSpec((1, x_dim, 1), lambda c, i: (c, 0, 0))],
        ),
        compiler_params=pltpu.CompilerParams(
            dimension_semantics=(sem0, pltpu.ARBITRARY)),
    )(slab, *kern_params)

    # ---- finalize in the wrapper (tiny arrays, runs once) --------------------------
    g = jnp.sum(g_part, axis=0)                       # (x_dim, h_width)
    xsum = jnp.sum(xsum_part, axis=0)[:, 0]           # (x_dim,)
    w_r = jnp.transpose(w_out.reshape(h_width, x_dim, y_dim), (1, 0, 2))  # (x_dim, h, y)
    b_r = b_out.reshape(x_dim, y_dim)
    hp = lax.Precision.HIGHEST
    y_row = (jnp.tensordot(g, w_r, axes=([0, 1], [0, 1]), precision=hp)
             + jnp.tensordot(xsum, b_r, axes=([0], [0]), precision=hp))
    y_row = y_row * (1.0 / (n * x_dim))
    return jnp.broadcast_to(y_row.reshape(1, y_dim), (n, y_dim))   # free expand outside


def init_basenet_params(key, in_dim, h_dim, out_dim, n_layers):
    """Deterministic synthetic weights for the BaseNet MLP."""
    params = []
    dims = [in_dim] + [h_dim] * n_layers + [out_dim]
    for i in range(len(dims) - 1):
        key, kw = jax.random.split(key)
        w = 0.1 * jax.random.normal(kw, (dims[i], dims[i + 1]), jnp.float32)
        b = jnp.full((1, dims[i + 1]), 0.01, jnp.float32)
        params.extend([w, b])
    return params


if __name__ == "__main__":
    # Small shapes consistent with the module's forward.
    N = 8
    X_DIM = 4
    Y_DIM = 8
    H_DIM = 32
    N_LAYERS = 2
    X_SCALE = 1.5
    ALPHA, GAMMA = 0.9, 1.0   # hyper-params of the unknown BaseNet; unused in forward

    key = jax.random.PRNGKey(0)
    k1, k2, k3 = jax.random.split(key, 3)
    x = jax.random.normal(k1, (N, X_DIM), jnp.float32)
    x_ref = jax.random.normal(k2, (N, 3), jnp.float32)
    params = init_basenet_params(k3, 3, H_DIM, X_DIM * Y_DIM, N_LAYERS)

    def reference(xv, xrv):
        hp = lax.Precision.HIGHEST
        h = xrv * X_SCALE
        for l in range(N_LAYERS):
            h = jnp.maximum(
                jnp.matmul(h, params[2 * l], precision=hp) + params[2 * l + 1], 0.0)
        y1 = (jnp.matmul(h, params[2 * N_LAYERS], precision=hp)
              + params[2 * N_LAYERS + 1]).reshape(xv.shape[0], X_DIM, Y_DIM)
        x1 = xv.reshape(xv.shape[0], X_DIM, 1)
        row = (y1 * x1).mean(axis=(0, 1)).reshape(1, -1)
        return jnp.broadcast_to(row, (xv.shape[0], Y_DIM))

    out = encoder3_forward(x, x_ref, params, x_dim=X_DIM, y_dim=Y_DIM,
                           n_layers=N_LAYERS, x_scale=X_SCALE)
    jax.block_until_ready(out)
    assert out.shape == (N, Y_DIM)
    assert jnp.allclose(out, reference(x, x_ref), atol=3e-5, rtol=2e-4)

    # Larger N exercising the multi-tile scan + zero-padding path.
    N2 = 1000
    k4, k5 = jax.random.split(jax.random.PRNGKey(1))
    x2 = jax.random.normal(k4, (N2, X_DIM), jnp.float32)
    xr2 = jax.random.normal(k5, (N2, 3), jnp.float32)
    out2 = encoder3_forward(x2, xr2, params, x_dim=X_DIM, y_dim=Y_DIM,
                            n_layers=N_LAYERS, x_scale=X_SCALE, tile_n=128)
    jax.block_until_ready(out2)
    assert out2.shape == (N2, Y_DIM)
    assert jnp.allclose(out2, reference(x2, xr2), atol=3e-5, rtol=2e-4)

    # Two row splits (per-split partial g / xsum reduced in the wrapper).
    out3 = encoder3_forward(x2, xr2, params, x_dim=X_DIM, y_dim=Y_DIM,
                            n_layers=N_LAYERS, x_scale=X_SCALE,
                            tile_n=128, num_row_splits=2)
    jax.block_until_ready(out3)
    assert out3.shape == (N2, Y_DIM)
    assert jnp.allclose(out3, reference(x2, xr2), atol=3e-5, rtol=2e-4)

    print("KERNEL_OK")
</pallas_src>

<mosaic_0001>
module attributes {stable_mosaic.version = 11 : i64} {
  func.func @_encoder3_kernel(%arg0: i32, %arg1: i32, %arg2: memref<12x128xf32, #tpu.memory_space<vmem>>, %arg3: memref<8x32xf32, #tpu.memory_space<vmem>>, %arg4: memref<1x32xf32, #tpu.memory_space<vmem>>, %arg5: memref<32x32xf32, #tpu.memory_space<vmem>>, %arg6: memref<1x32xf32, #tpu.memory_space<vmem>>, %arg7: memref<1x4x32xf32, #tpu.memory_space<vmem>>, %arg8: memref<1x4x1xf32, #tpu.memory_space<vmem>>) attributes {dimension_semantics = [#tpu.dimension_semantics<parallel>, #tpu.dimension_semantics<arbitrary>], iteration_bounds = array<i64: 1, 1>, scalar_prefetch = 0 : i64, scratch_operands = 0 : i64, tpu.core_type = #tpu.core_type<tc>, window_params = [{transform_indices = @transform_0, window_bounds = array<i64: 12, 128>}, {pipeline_mode = #tpu.pipeline_mode<synchronous>, transform_indices = @transform_1, window_bounds = array<i64: 8, 32>}, {pipeline_mode = #tpu.pipeline_mode<synchronous>, transform_indices = @transform_2, window_bounds = array<i64: 1, 32>}, {pipeline_mode = #tpu.pipeline_mode<synchronous>, transform_indices = @transform_3, window_bounds = array<i64: 32, 32>}, {pipeline_mode = #tpu.pipeline_mode<synchronous>, transform_indices = @transform_4, window_bounds = array<i64: 1, 32>}, {transform_indices = @transform_5, window_bounds = array<i64: 1, 4, 32>}, {transform_indices = @transform_6, window_bounds = array<i64: 1, 4, 1>}]} {
    %c0_i32 = arith.constant 0 : i32
    %0 = arith.cmpi eq, %arg1, %c0_i32 : i32
    %1 = arith.extui %0 : i1 to i32
    %c0_i32_0 = arith.constant 0 : i32
    %2 = arith.cmpi ne, %1, %c0_i32_0 : i32
    scf.if %2 {
      %cst_28 = arith.constant 0.000000e+00 : f32
      %35 = vector.broadcast %cst_28 : f32 to vector<1x4x32xf32>
      %c0_29 = arith.constant 0 : index
      %c0_30 = arith.constant 0 : index
      %c0_31 = arith.constant 0 : index
      %36 = vector.load %arg7[%c0_29, %c0_30, %c0_31] : memref<1x4x32xf32, #tpu.memory_space<vmem>>, vector<1x4x32xf32>
      tpu.vector_store %arg7[%c0_29, %c0_30, %c0_31], %35 {strides = array<i32>} : memref<1x4x32xf32, #tpu.memory_space<vmem>>, vector<1x4x32xf32>,
      %cst_32 = arith.constant 0.000000e+00 : f32
      %37 = vector.broadcast %cst_32 : f32 to vector<1x4x1xf32>
      %c0_33 = arith.constant 0 : index
      %c0_34 = arith.constant 0 : index
      %c0_35 = arith.constant 0 : index
      %38 = vector.load %arg8[%c0_33, %c0_34, %c0_35] : memref<1x4x1xf32, #tpu.memory_space<vmem>>, vector<1x4x1xf32>
      tpu.vector_store %arg8[%c0_33, %c0_34, %c0_35], %37 {strides = array<i32>} : memref<1x4x1xf32, #tpu.memory_space<vmem>>, vector<1x4x1xf32>,
    } else {
    }
    %c0 = arith.constant 0 : index
    %c0_1 = arith.constant 0 : index
    %3 = vector.load %arg2[%c0, %c0_1] : memref<12x128xf32, #tpu.memory_space<vmem>>, vector<8x128xf32>
    %c8 = arith.constant 8 : index
    %c0_2 = arith.constant 0 : index
    %4 = vector.load %arg2[%c8, %c0_2] : memref<12x128xf32, #tpu.memory_space<vmem>>, vector<4x128xf32>
    %5 = tpu.transpose %3, [1, 0] : vector<8x128xf32> -> vector<128x8xf32>
    %c0_3 = arith.constant 0 : index
    %c0_4 = arith.constant 0 : index
    %6 = vector.load %arg3[%c0_3, %c0_4] : memref<8x32xf32, #tpu.memory_space<vmem>>, vector<8x32xf32>
    %c0_5 = arith.constant 0 : index
    %c0_6 = arith.constant 0 : index
    %7 = vector.load %arg4[%c0_5, %c0_6] : memref<1x32xf32, #tpu.memory_space<vmem>>, vector<1x32xf32>
    %cst = arith.constant dense<0.000000e+00> : vector<128x32xf32>
    %8 = tpu.matmul %5, %6, %cst {dimension_numbers = #tpu.dot_dimension_numbers<[1], [0], [0], [1], [0, 0, 1, 1], [], []>} : vector<128x8xf32>, vector<8x32xf32>, vector<128x32xf32> -> vector<128x32xf32>
    %9 = vector.broadcast %7 : vector<1x32xf32> to vector<128x32xf32>
    %10 = arith.addf %8, %9 : vector<128x32xf32>
    %cst_7 = arith.constant 0.000000e+00 : f32
    %11 = vector.broadcast %cst_7 : f32 to vector<128x32xf32>
    %12 = arith.maximumf %10, %11 : vector<128x32xf32>
    %c0_8 = arith.constant 0 : index
    %c0_9 = arith.constant 0 : index
    %13 = vector.load %arg5[%c0_8, %c0_9] : memref<32x32xf32, #tpu.memory_space<vmem>>, vector<32x32xf32>
    %c0_10 = arith.constant 0 : index
    %c0_11 = arith.constant 0 : index
    %14 = vector.load %arg6[%c0_10, %c0_11] : memref<1x32xf32, #tpu.memory_space<vmem>>, vector<1x32xf32>
    %cst_12 = arith.constant dense<0.000000e+00> : vector<128x32xf32>
    %15 = tpu.matmul %12, %13, %cst_12 {dimension_numbers = #tpu.dot_dimension_numbers<[1], [0], [0], [1], [0, 0, 1, 1], [], []>} : vector<128x32xf32>, vector<32x32xf32>, vector<128x32xf32> -> vector<128x32xf32>
    %16 = vector.broadcast %14 : vector<1x32xf32> to vector<128x32xf32>
    %17 = arith.addf %15, %16 : vector<128x32xf32>
    %cst_13 = arith.constant 0.000000e+00 : f32
    %18 = vector.broadcast %cst_13 : f32 to vector<128x32xf32>
    %19 = arith.maximumf %17, %18 : vector<128x32xf32>
    %c0_14 = arith.constant 0 : index
    %c0_15 = arith.constant 0 : index
    %c0_16 = arith.constant 0 : index
    %20 = vector.load %arg7[%c0_14, %c0_15, %c0_16] : memref<1x4x32xf32, #tpu.memory_space<vmem>>, vector<1x4x32xf32>
    %21 = vector.shape_cast %20 : vector<1x4x32xf32> to vector<4x32xf32>
    %cst_17 = arith.constant dense<0.000000e+00> : vector<4x32xf32>
    %22 = tpu.matmul %4, %19, %cst_17 {dimension_numbers = #tpu.dot_dimension_numbers<[1], [0], [0], [1], [0, 0, 1, 1], [], []>} : vector<4x128xf32>, vector<128x32xf32>, vector<4x32xf32> -> vector<4x32xf32>
    %23 = arith.addf %21, %22 : vector<4x32xf32>
    %c0_18 = arith.constant 0 : index
    %c0_19 = arith.constant 0 : index
    %c0_20 = arith.constant 0 : index
    %24 = vector.load %arg7[%c0_18, %c0_19, %c0_20] : memref<1x4x32xf32, #tpu.memory_space<vmem>>, vector<1x4x32xf32>
    %25 = vector.shape_cast %24 : vector<1x4x32xf32> to vector<4x32xf32>
    %26 = vector.shape_cast %23 : vector<4x32xf32> to vector<1x4x32xf32>
    tpu.vector_store %arg7[%c0_18, %c0_19, %c0_20], %26 {strides = array<i32>} : memref<1x4x32xf32, #tpu.memory_space<vmem>>, vector<1x4x32xf32>,
    %c0_21 = arith.constant 0 : index
    %c0_22 = arith.constant 0 : index
    %c0_23 = arith.constant 0 : index
    %27 = vector.load %arg8[%c0_21, %c0_22, %c0_23] : memref<1x4x1xf32, #tpu.memory_space<vmem>>, vector<1x4x1xf32>
    %28 = vector.shape_cast %27 : vector<1x4x1xf32> to vector<4x1xf32>
    %cst_24 = arith.constant dense<0.000000e+00> : vector<4xf32>
    %29 = vector.multi_reduction <add>, %4, %cst_24 [1] : vector<4x128xf32> to vector<4xf32>
    %30 = vector.shape_cast %29 : vector<4xf32> to vector<4x1xf32>
    %31 = arith.addf %28, %30 : vector<4x1xf32>
    %c0_25 = arith.constant 0 : index
    %c0_26 = arith.constant 0 : index
    %c0_27 = arith.constant 0 : index
    %32 = vector.load %arg8[%c0_25, %c0_26, %c0_27] : memref<1x4x1xf32, #tpu.memory_space<vmem>>, vector<1x4x1xf32>
    %33 = vector.shape_cast %32 : vector<1x4x1xf32> to vector<4x1xf32>
    %34 = vector.shape_cast %31 : vector<4x1xf32> to vector<1x4x1xf32>
    tpu.vector_store %arg8[%c0_25, %c0_26, %c0_27], %34 {strides = array<i32>} : memref<1x4x1xf32, #tpu.memory_space<vmem>>, vector<1x4x1xf32>,
    return
  }
  func.func @transform_0(%arg0: i32, %arg1: i32) -> (i32, i32) {
    %c1_i32 = arith.constant 1 : i32
    %0 = arith.muli %arg0, %c1_i32 : i32
    %1 = arith.addi %0, %arg1 : i32
    %c0_i32 = arith.constant 0 : i32
    %c0_i32_0 = arith.constant 0 : i32
    return %c0_i32, %1 : i32, i32
  }
  func.func @transform_1(%arg0: i32, %arg1: i32) -> (i32, i32) {
    %c0_i32 = arith.constant 0 : i32
    %c0_i32_0 = arith.constant 0 : i32
    %c0_i32_1 = arith.constant 0 : i32
    return %c0_i32, %c0_i32_0 : i32, i32
  }
  func.func @transform_2(%arg0: i32, %arg1: i32) -> (i32, i32) {
    %c0_i32 = arith.constant 0 : i32
    %c0_i32_0 = arith.constant 0 : i32
    %c0_i32_1 = arith.constant 0 : i32
    return %c0_i32, %c0_i32_0 : i32, i32
  }
  func.func @transform_3(%arg0: i32, %arg1: i32) -> (i32, i32) {
    %c0_i32 = arith.constant 0 : i32
    %c0_i32_0 = arith.constant 0 : i32
    %c0_i32_1 = arith.constant 0 : i32
    return %c0_i32, %c0_i32_0 : i32, i32
  }
  func.func @transform_4(%arg0: i32, %arg1: i32) -> (i32, i32) {
    %c0_i32 = arith.constant 0 : i32
    %c0_i32_0 = arith.constant 0 : i32
    %c0_i32_1 = arith.constant 0 : i32
    return %c0_i32, %c0_i32_0 : i32, i32
  }
  func.func @transform_5(%arg0: i32, %arg1: i32) -> (i32, i32, i32) {
    %c0_i32 = arith.constant 0 : i32
    %c0_i32_0 = arith.constant 0 : i32
    %c0_i32_1 = arith.constant 0 : i32
    return %arg0, %c0_i32, %c0_i32_0 : i32, i32, i32
  }
  func.func @transform_6(%arg0: i32, %arg1: i32) -> (i32, i32, i32) {
    %c0_i32 = arith.constant 0 : i32
    %c0_i32_0 = arith.constant 0 : i32
    %c0_i32_1 = arith.constant 0 : i32
    return %arg0, %c0_i32, %c0_i32_0 : i32, i32, i32
  }
}

</mosaic_0001>

<llo_original>
// kernel: tpu_custom_call.1
$region0: #{tpu_custom_call.1}
  #allocation0 [shape = 'u32[]', space=smem, size = 0x4, offset = 0x4, fixed_abs, tag = 'smem constant byte address 0x4 - core index']
  #allocation1 [shape = 'u32[144,128]{1,0:T(1,128)}', space=vmem, size = 0x12000, scoped, tag = 'internal scratch']
  %s0 = inlined_call_operand.hbm [shape: f32[12,128], index: 0, kind: input, shape index: {}]
  %s1 = inlined_call_operand.hbm [shape: f32[8,32], index: 1, kind: input, shape index: {}]
  %s2 = inlined_call_operand.vmem [shape: f32[1,32], index: 2, kind: input, shape index: {}]
  %s3 = inlined_call_operand.hbm [shape: f32[32,32], index: 3, kind: input, shape index: {}]
  %s4 = inlined_call_operand.vmem [shape: f32[1,32], index: 4, kind: input, shape index: {}]
  %s5 = inlined_call_operand.hbm [shape: f32[1,4,32], index: 5, kind: output, shape index: {0}]
  %s6 = inlined_call_operand.vmem [shape: f32[1,4,1], index: 6, kind: output, shape index: {1}]
  %7 = xla_tuple %s5, %s6
  %s8 = sld [smem:[#allocation0]]
  $region54: #{tpu_custom_call.1} parent=0
    _
  %s10 = ssub.s32 1, %s8
  %s11 = scalar_select 0, %s10, %s8
  $region1: #{tpu_custom_call.1} parent=0
    #allocation2 [shape = 'u8[8192]{0}', space=vmem, size = 0x2000, scoped, tag = 'input window, operand 0, single buffered']
    #allocation3 [shape = 's32[1]{0}', space=sflag, size = 0x4, scoped, tag = 'scoped memory for tpu_custom_call.1']
    #allocation4 [shape = 's32[1]{0}', space=sflag, size = 0x4, scoped, tag = 'scoped memory for tpu_custom_call.1']
    #allocation5 [shape = 'u8[4096]{0}', space=vmem, size = 0x1000, scoped, tag = 'input window, operand 1, single buffered']
    #allocation6 [shape = 's32[1]{0}', space=sflag, size = 0x4, scoped, tag = 'scoped memory for tpu_custom_call.1']
    #allocation7 [shape = 'u8[16384]{0}', space=vmem, size = 0x4000, scoped, tag = 'input window, operand 3, single buffered']
    #allocation8 [shape = 'u8[2048]{0}', space=vmem, size = 0x800, scoped, tag = 'output window, operand 0, single buffered']
    %12 = vsyncpa [#allocation3], 0
    %13 = vsyncpa [#allocation6], 0
    %14 = vsyncpa [#allocation4], 0
    // Predicated region
    $region2: #{tpu_custom_call.1} parent=1 // pred_check
      _
    $region3: #{tpu_custom_call.1} parent=1 // pred_check_branch
      %16 = sbr.rel (0) target = $region5
    $region4: #{tpu_custom_call.1} parent=1 // pred_region
      %s17 = sadd.s32 0, 0
      %s19 = ssub.s32 256, 256
      %20 = vsyncadd [#allocation3], %s19
      %s21 = smul.addr %s17, 128
      %s22 = scalar_lea.hbm %s0, %s21
      %s23 = sshll.u32 [#allocation2], 4
      %s24 = int_to_ptr.vmem [resolvable:$true] %s23
      %29 = dma.hbm_to_vmem [thread:$0]  %s22, 256, %s24, [#allocation3], 128, 128, 8
    $region5: #{tpu_custom_call.1} parent=1 // pred_fallthru
      _
    // Predicated region
    $region6: #{tpu_custom_call.1} parent=1 // pred_check
      _
    $region7: #{tpu_custom_call.1} parent=1 // pred_check_branch
      %31 = sbr.rel (0) target = $region9
    $region8: #{tpu_custom_call.1} parent=1 // pred_region
      %s33 = ssub.s32 128, 128
      %34 = vsyncadd [#allocation6], %s33
      %s36 = sshll.u32 [#allocation5], 4
      %s37 = int_to_ptr.vmem [resolvable:$true] %s36
      %39 = dma.hbm_to_vmem [thread:$0]  %s1, 128, %s37, [#allocation6]
    $region9: #{tpu_custom_call.1} parent=1 // pred_fallthru
      _
    // Predicated region
    $region10: #{tpu_custom_call.1} parent=1 // pred_check
      _
    $region11: #{tpu_custom_call.1} parent=1 // pred_check_branch
      %41 = sbr.rel (0) target = $region13
    $region12: #{tpu_custom_call.1} parent=1 // pred_region
      _
    $region13: #{tpu_custom_call.1} parent=1 // pred_fallthru
      _
    // Predicated region
    $region14: #{tpu_custom_call.1} parent=1 // pred_check
      _
    $region15: #{tpu_custom_call.1} parent=1 // pred_check_branch
      %43 = sbr.rel (0) target = $region17
    $region16: #{tpu_custom_call.1} parent=1 // pred_region
      %s45 = ssub.s32 512, 512
      %46 = vsyncadd [#allocation6], %s45
      %s47 = sshll.u32 [#allocation7], 4
      %s48 = int_to_ptr.vmem [resolvable:$true] %s47
      %53 = dma.hbm_to_vmem [thread:$0]  %s3, 512, %s48, [#allocation6], 128, 128, 8
    $region17: #{tpu_custom_call.1} parent=1 // pred_fallthru
      _
    // Predicated region
    $region18: #{tpu_custom_call.1} parent=1 // pred_check
      _
    $region19: #{tpu_custom_call.1} parent=1 // pred_check_branch
      %55 = sbr.rel (0) target = $region21
    $region20: #{tpu_custom_call.1} parent=1 // pred_region
      _
    $region21: #{tpu_custom_call.1} parent=1 // pred_fallthru
      _
    // Predicated region
    $region22: #{tpu_custom_call.1} parent=1 // pred_check
      _
    $region23: #{tpu_custom_call.1} parent=1 // pred_check_branch
      %57 = sbr.rel (0) target = $region25
    $region24: #{tpu_custom_call.1} parent=1 // pred_region
      %58 = dma.done [#allocation3], 256
    $region25: #{tpu_custom_call.1} parent=1 // pred_fallthru
      _
    // Predicated region
    $region26: #{tpu_custom_call.1} parent=1 // pred_check
      _
    $region27: #{tpu_custom_call.1} parent=1 // pred_check_branch
      %60 = sbr.rel (0) target = $region29
    $region28: #{tpu_custom_call.1} parent=1 // pred_region
      %61 = dma.done [#allocation6], 128
    $region29: #{tpu_custom_call.1} parent=1 // pred_fallthru
      _
    // Predicated region
    $region30: #{tpu_custom_call.1} parent=1 // pred_check
      _
    $region31: #{tpu_custom_call.1} parent=1 // pred_check_branch
      %63 = sbr.rel (0) target = $region33
    $region32: #{tpu_custom_call.1} parent=1 // pred_region
      %64 = dma.done [#allocation6], 512
    $region33: #{tpu_custom_call.1} parent=1 // pred_fallthru
      _
    %s65 = sadd.s32 0, 0
    %p66 = scmp.eq.s32.totalorder 0, 0
    // Predicated region
    $region34: #{tpu_custom_call.1} parent=1 // pred_check
      %p67 = pneg %p66
    $region35: #{tpu_custom_call.1} parent=1 // pred_check_branch
      %69 = sbr.rel (%p67) target = $region37
    $region36: #{tpu_custom_call.1} parent=1 // pred_region
      %vm70 = vcmask 257024
      %71 = vst.msk [vmem:[#allocation8] sm:$0xf] %vm70, 0.0
      %vm72 = vcmask 3072
      %73 = vst.msk [vmem:[%s6] sm:$0xf] %vm72, 0.0
    $region37: #{tpu_custom_call.1} parent=1 // pred_fallthru
      _
    %v74 = vld [vmem:[#allocation2] sm:$0xff]
    %v75 = vld [vmem:[#allocation2 + $0x8] sm:$0xf]
    %76 = vxpose.xlu0.b32.start [1/16] %v74, 128
    %77 = vxpose.xlu0.b32.cont [2/16] 0.0, 128
    %78 = vxpose.xlu0.b32.cont [3/16] 0.0, 128
    %79 = vxpose.xlu0.b32.cont [4/16] 0.0, 128
    %80 = vxpose.xlu0.b32.cont [5/16] 0.0, 128
    %81 = vxpose.xlu0.b32.cont [6/16] 0.0, 128
    %82 = vxpose.xlu0.b32.cont [7/16] 0.0, 128
    %83 = vxpose.xlu0.b32.cont [8/16] 0.0, 128
    %84 = vxpose.xlu0.b32.cont [9/16] 0.0, 128
    %85 = vxpose.xlu0.b32.cont [10/16] 0.0, 128
    %86 = vxpose.xlu0.b32.cont [11/16] 0.0, 128
    %87 = vxpose.xlu0.b32.cont [12/16] 0.0, 128
    %88 = vxpose.xlu0.b32.cont [13/16] 0.0, 128
    %89 = vxpose.xlu0.b32.cont [14/16] 0.0, 128
    %90 = vxpose.xlu0.b32.cont [15/16] 0.0, 128
    %91 = vxpose.xlu0.b32.end [16/16] 0.0, 128
    %v92 = vpop.trf.xlu0
    %v93 = vpop.trf.xlu0
    %v94 = vpop.trf.xlu0
    %v95 = vpop.trf.xlu0
    %v96 = vpop.trf.xlu0
    %v97 = vpop.trf.xlu0
    %v98 = vpop.trf.xlu0
    %v99 = vpop.trf.xlu0
    %v100 = vpop.trf.xlu0
    %v101 = vpop.trf.xlu0
    %v102 = vpop.trf.xlu0
    %v103 = vpop.trf.xlu0
    %v104 = vpop.trf.xlu0
    %v105 = vpop.trf.xlu0
    %v106 = vpop.trf.xlu0
    %v107 = vpop.trf.xlu0
    %v108 = vld [vmem:[#allocation5] sm:$0xff]
    %v109 = vld [vmem:[%s2] sm:$0x1]
    %v111 = vlaneseq
    %v112 = vshrl.u32 %v111, 7
    %v113 = vsub.s32 0, %v112
    %v114 = vrot.slane %v109, %v113
    %vm116 = vcmask 64512
    %v118 = vsel %vm116, %v92, 0
    %v121 = vsel %vm116, %v93, 0
    %v124 = vsel %vm116, %v94, 0
    %v127 = vsel %vm116, %v95, 0
    %v130 = vsel %vm116, %v96, 0
    %v133 = vsel %vm116, %v97, 0
    %v136 = vsel %vm116, %v98, 0
    %v139 = vsel %vm116, %v99, 0
    %v142 = vsel %vm116, %v100, 0
    %v145 = vsel %vm116, %v101, 0
    %v148 = vsel %vm116, %v102, 0
    %v151 = vsel %vm116, %v103, 0
    %v154 = vsel %vm116, %v104, 0
    %v157 = vsel %vm116, %v105, 0
    %v160 = vsel %vm116, %v106, 0
    %v163 = vsel %vm116, %v107, 0
    %165 = vmatprep.subr.mxu0 0.0
    %166 = vmatpush1.msra.mxu0 0.0
    %167 = vmatprep.subr.mxu0 0.0
    %168 = vmatpush1.msra.mxu0 0.0
    %169 = vmatprep.subr.mxu0 0.0
    %170 = vmatpush1.msra.mxu0 0.0
    %171 = vmatprep.subr.mxu0 0.0
    %172 = vmatpush1.msra.mxu0 0.0
    %173 = vmatprep.subr.mxu0 0.0
    %174 = vmatpush1.msra.mxu0 0.0
    %175 = vmatprep.subr.mxu0 0.0
    %176 = vmatpush1.msra.mxu0 0.0
    %177 = vmatprep.subr.mxu0 0.0
    %178 = vmatpush1.msra.mxu0 0.0
    %179 = vmatprep.subr.mxu0 0.0
    %180 = vmatpush1.msra.mxu0 0.0
    %181 = vmatprep.subr.mxu0 0.0
    %182 = vmatpush1.msra.mxu0 0.0
    %183 = vmatprep.subr.mxu0 0.0
    %184 = vmatpush1.msra.mxu0 0.0
    %185 = vmatprep.subr.mxu0 0.0
    %186 = vmatpush1.msra.mxu0 0.0
    %187 = vmatprep.subr.mxu0 0.0
    %188 = vmatpush1.msra.mxu0 0.0
    %189 = vmatprep.subr.mxu0 0.0
    %190 = vmatpush1.msra.mxu0 0.0
    %191 = vmatprep.subr.mxu0 0.0
    %192 = vmatpush1.msra.mxu0 0.0
    %193 = vmatprep.subr.mxu0 0.0
    %194 = vmatpush1.msra.mxu0 0.0
    %195 = vmatprep.subr.mxu0 0.0
    %196 = vmatpush1.msra.mxu0 %v108
    %197 = vmatprep.subr.mxu0 0.0
    %198 = vmatpush2.msra.mxu0 0.0
    %199 = vmatprep.subr.mxu0 0.0
    %200 = vmatpush2.msra.mxu0 0.0
    %201 = vmatprep.subr.mxu0 0.0
    %202 = vmatpush2.msra.mxu0 0.0
    %203 = vmatprep.subr.mxu0 0.0
    %204 = vmatpush2.msra.mxu0 0.0
    %205 = vmatprep.subr.mxu0 0.0
    %206 = vmatpush2.msra.mxu0 0.0
    %207 = vmatprep.subr.mxu0 0.0
    %208 = vmatpush2.msra.mxu0 0.0
    %209 = vmatprep.subr.mxu0 0.0
    %210 = vmatpush2.msra.mxu0 0.0
    %211 = vmatprep.subr.mxu0 0.0
    %212 = vmatpush2.msra.mxu0 0.0
    %213 = vmatprep.subr.mxu0 0.0
    %214 = vmatpush2.msra.mxu0 0.0
    %215 = vmatprep.subr.mxu0 0.0
    %216 = vmatpush2.msra.mxu0 0.0
    %217 = vmatprep.subr.mxu0 0.0
    %218 = vmatpush2.msra.mxu0 0.0
    %219 = vmatprep.subr.mxu0 0.0
    %220 = vmatpush2.msra.mxu0 0.0
    %221 = vmatprep.subr.mxu0 0.0
    %222 = vmatpush2.msra.mxu0 0.0
    %223 = vmatprep.subr.mxu0 0.0
    %224 = vmatpush2.msra.mxu0 0.0
    %225 = vmatprep.subr.mxu0 0.0
    %226 = vmatpush2.msra.mxu0 0.0
    %227 = vmatprep.subr.mxu0 0.0
    %228 = vmatpush2.msra.mxu0 0.0
    %229 = vmatprep.mubr.f32.mxu0 0.0
    %230 = vmatmul.mubr.f32.gmra.mxu0 %v118
    %v231 = vpop.f32.mrf.mxu0
    %v232 = vadd.f32 %v114, %v231
    %v233 = vpop.f32.mrf.mxu0
    %234 = vmatprep.mubr.f32.mxu0 0.0
    %235 = vmatmul.mubr.f32.gmra.mxu0 %v121
    %v236 = vpop.f32.mrf.mxu0
    %v237 = vadd.f32 %v114, %v236
    %v238 = vpop.f32.mrf.mxu0
    %239 = vmatprep.mubr.f32.mxu0 0.0
    %240 = vmatmul.mubr.f32.gmra.mxu0 %v124
    %v241 = vpop.f32.mrf.mxu0
    %v242 = vadd.f32 %v114, %v241
    %v243 = vpop.f32.mrf.mxu0
    %244 = vmatprep.mubr.f32.mxu0 0.0
    %245 = vmatmul.mubr.f32.gmra.mxu0 %v127
    %v246 = vpop.f32.mrf.mxu0
    %v247 = vadd.f32 %v114, %v246
    %v248 = vpop.f32.mrf.mxu0
    %249 = vmatprep.mubr.f32.mxu0 0.0
    %250 = vmatmul.mubr.f32.gmra.mxu0 %v130
    %v251 = vpop.f32.mrf.mxu0
    %v252 = vadd.f32 %v114, %v251
    %v253 = vpop.f32.mrf.mxu0
    %254 = vmatprep.mubr.f32.mxu0 0.0
    %255 = vmatmul.mubr.f32.gmra.mxu0 %v133
    %v256 = vpop.f32.mrf.mxu0
    %v257 = vadd.f32 %v114, %v256
    %v258 = vpop.f32.mrf.mxu0
    %259 = vmatprep.mubr.f32.mxu0 0.0
    %260 = vmatmul.mubr.f32.gmra.mxu0 %v136
    %v261 = vpop.f32.mrf.mxu0
    %v262 = vadd.f32 %v114, %v261
    %v263 = vpop.f32.mrf.mxu0
    %264 = vmatprep.mubr.f32.mxu0 0.0
    %265 = vmatmul.mubr.f32.gmra.mxu0 %v139
    %v266 = vpop.f32.mrf.mxu0
    %v267 = vadd.f32 %v114, %v266
    %v268 = vpop.f32.mrf.mxu0
    %269 = vmatprep.mubr.f32.mxu0 0.0
    %270 = vmatmul.mubr.f32.gmra.mxu0 %v142
    %v271 = vpop.f32.mrf.mxu0
    %v272 = vadd.f32 %v114, %v271
    %v273 = vpop.f32.mrf.mxu0
    %274 = vmatprep.mubr.f32.mxu0 0.0
    %275 = vmatmul.mubr.f32.gmra.mxu0 %v145
    %v276 = vpop.f32.mrf.mxu0
    %v277 = vadd.f32 %v114, %v276
    %v278 = vpop.f32.mrf.mxu0
    %279 = vmatprep.mubr.f32.mxu0 0.0
    %280 = vmatmul.mubr.f32.gmra.mxu0 %v148
    %v281 = vpop.f32.mrf.mxu0
    %v282 = vadd.f32 %v114, %v281
    %v283 = vpop.f32.mrf.mxu0
    %284 = vmatprep.mubr.f32.mxu0 0.0
    %285 = vmatmul.mubr.f32.gmra.mxu0 %v151
    %v286 = vpop.f32.mrf.mxu0
    %v287 = vadd.f32 %v114, %v286
    %v288 = vpop.f32.mrf.mxu0
    %289 = vmatprep.mubr.f32.mxu0 0.0
    %290 = vmatmul.mubr.f32.gmra.mxu0 %v154
    %v291 = vpop.f32.mrf.mxu0
    %v292 = vadd.f32 %v114, %v291
    %v293 = vpop.f32.mrf.mxu0
    %294 = vmatprep.mubr.f32.mxu0 0.0
    %295 = vmatmul.mubr.f32.gmra.mxu0 %v157
    %v296 = vpop.f32.mrf.mxu0
    %v297 = vadd.f32 %v114, %v296
    %v298 = vpop.f32.mrf.mxu0
    %299 = vmatprep.mubr.f32.mxu0 0.0
    %300 = vmatmul.mubr.f32.gmra.mxu0 %v160
    %v301 = vpop.f32.mrf.mxu0
    %v302 = vadd.f32 %v114, %v301
    %v303 = vpop.f32.mrf.mxu0
    %304 = vmatprep.mubr.f32.mxu0 0.0
    %305 = vmatmul.mubr.f32.gmra.mxu0 %v163
    %v306 = vpop.f32.mrf.mxu0
    %v307 = vadd.f32 %v114, %v306
    %v308 = vpop.f32.mrf.mxu0
    %309 = vdwg.mxu0
    %v310 = vmax.f32 %v232, 0.0
    %v311 = vmax.f32 %v237, 0.0
    %v312 = vmax.f32 %v242, 0.0
    %v313 = vmax.f32 %v247, 0.0
    %v314 = vmax.f32 %v252, 0.0
    %v315 = vmax.f32 %v257, 0.0
    %v316 = vmax.f32 %v262, 0.0
    %v317 = vmax.f32 %v267, 0.0
    %v318 = vmax.f32 %v272, 0.0
    %v319 = vmax.f32 %v277, 0.0
    %v320 = vmax.f32 %v282, 0.0
    %v321 = vmax.f32 %v287, 0.0
    %v322 = vmax.f32 %v292, 0.0
    %v323 = vmax.f32 %v297, 0.0
    %v324 = vmax.f32 %v302, 0.0
    %v325 = vmax.f32 %v307, 0.0
    %v326 = vld [vmem:[#allocation7] sm:$0xff]
    %v327 = vld [vmem:[#allocation7 + $0x8] sm:$0xff]
    %v328 = vld [vmem:[#allocation7 + $0x10] sm:$0xff]
    %v329 = vld [vmem:[#allocation7 + $0x18] sm:$0xff]
    %v330 = vld [vmem:[%s4] sm:$0x1]
    %v332 = vlaneseq
    %v333 = vshrl.u32 %v332, 7
    %v334 = vsub.s32 0, %v333
    %v335 = vrot.slane %v330, %v334
    %vm337 = vcmask 261120
    %v339 = vsel %vm337, %v310, 0
    %v342 = vsel %vm337, %v311, 0
    %v345 = vsel %vm337, %v312, 0
    %v348 = vsel %vm337, %v313, 0
    %v351 = vsel %vm337, %v314, 0
    %v354 = vsel %vm337, %v315, 0
    %v357 = vsel %vm337, %v316, 0
    %v360 = vsel %vm337, %v317, 0
    %v363 = vsel %vm337, %v318, 0
    %v366 = vsel %vm337, %v319, 0
    %v369 = vsel %vm337, %v320, 0
    %v372 = vsel %vm337, %v321, 0
    %v375 = vsel %vm337, %v322, 0
    %v378 = vsel %vm337, %v323, 0
    %v381 = vsel %vm337, %v324, 0
    %v384 = vsel %vm337, %v325, 0
    %386 = vmatprep.subr.mxu0 0.0
    %387 = vmatpush1.msra.mxu0 0.0
    %388 = vmatprep.subr.mxu0 0.0
    %389 = vmatpush1.msra.mxu0 0.0
    %390 = vmatprep.subr.mxu0 0.0
    %391 = vmatpush1.msra.mxu0 0.0
    %392 = vmatprep.subr.mxu0 0.0
    %393 = vmatpush1.msra.mxu0 0.0
    %394 = vmatprep.subr.mxu0 0.0
    %395 = vmatpush1.msra.mxu0 0.0
    %396 = vmatprep.subr.mxu0 0.0
    %397 = vmatpush1.msra.mxu0 0.0
    %398 = vmatprep.subr.mxu0 0.0
    %399 = vmatpush1.msra.mxu0 0.0
    %400 = vmatprep.subr.mxu0 0.0
    %401 = vmatpush1.msra.mxu0 0.0
    %402 = vmatprep.subr.mxu0 0.0
    %403 = vmatpush1.msra.mxu0 0.0
    %404 = vmatprep.subr.mxu0 0.0
    %405 = vmatpush1.msra.mxu0 0.0
    %406 = vmatprep.subr.mxu0 0.0
    %407 = vmatpush1.msra.mxu0 0.0
    %408 = vmatprep.subr.mxu0 0.0
    %409 = vmatpush1.msra.mxu0 0.0
    %410 = vmatprep.subr.mxu0 0.0
    %411 = vmatpush1.msra.mxu0 %v329
    %412 = vmatprep.subr.mxu0 0.0
    %413 = vmatpush1.msra.mxu0 %v328
    %414 = vmatprep.subr.mxu0 0.0
    %415 = vmatpush1.msra.mxu0 %v327
    %416 = vmatprep.subr.mxu0 0.0
    %417 = vmatpush1.msra.mxu0 %v326
    %418 = vmatprep.subr.mxu0 0.0
    %419 = vmatpush2.msra.mxu0 0.0
    %420 = vmatprep.subr.mxu0 0.0
    %421 = vmatpush2.msra.mxu0 0.0
    %422 = vmatprep.subr.mxu0 0.0
    %423 = vmatpush2.msra.mxu0 0.0
    %424 = vmatprep.subr.mxu0 0.0
    %425 = vmatpush2.msra.mxu0 0.0
    %426 = vmatprep.subr.mxu0 0.0
    %427 = vmatpush2.msra.mxu0 0.0
    %428 = vmatprep.subr.mxu0 0.0
    %429 = vmatpush2.msra.mxu0 0.0
    %430 = vmatprep.subr.mxu0 0.0
    %431 = vmatpush2.msra.mxu0 0.0
    %432 = vmatprep.subr.mxu0 0.0
    %433 = vmatpush2.msra.mxu0 0.0
    %434 = vmatprep.subr.mxu0 0.0
    %435 = vmatpush2.msra.mxu0 0.0
    %436 = vmatprep.subr.mxu0 0.0
    %437 = vmatpush2.msra.mxu0 0.0
    %438 = vmatprep.subr.mxu0 0.0
    %439 = vmatpush2.msra.mxu0 0.0
    %440 = vmatprep.subr.mxu0 0.0
    %441 = vmatpush2.msra.mxu0 0.0
    %442 = vmatprep.subr.mxu0 0.0
    %443 = vmatpush2.msra.mxu0 0.0
    %444 = vmatprep.subr.mxu0 0.0
    %445 = vmatpush2.msra.mxu0 0.0
    %446 = vmatprep.subr.mxu0 0.0
    %447 = vmatpush2.msra.mxu0 0.0
    %448 = vmatprep.subr.mxu0 0.0
    %449 = vmatpush2.msra.mxu0 0.0
    %450 = vmatprep.mubr.f32.mxu0 0.0
    %451 = vmatmul.mubr.f32.gmra.mxu0 %v339
    %v452 = vpop.f32.mrf.mxu0
    %v453 = vadd.f32 %v335, %v452
    %v454 = vpop.f32.mrf.mxu0
    %455 = vmatprep.mubr.f32.mxu0 0.0
    %456 = vmatmul.mubr.f32.gmra.mxu0 %v342
    %v457 = vpop.f32.mrf.mxu0
    %v458 = vadd.f32 %v335, %v457
    %v459 = vpop.f32.mrf.mxu0
    %460 = vmatprep.mubr.f32.mxu0 0.0
    %461 = vmatmul.mubr.f32.gmra.mxu0 %v345
    %v462 = vpop.f32.mrf.mxu0
    %v463 = vadd.f32 %v335, %v462
    %v464 = vpop.f32.mrf.mxu0
    %465 = vmatprep.mubr.f32.mxu0 0.0
    %466 = vmatmul.mubr.f32.gmra.mxu0 %v348
    %v467 = vpop.f32.mrf.mxu0
    %v468 = vadd.f32 %v335, %v467
    %v469 = vpop.f32.mrf.mxu0
    %470 = vmatprep.mubr.f32.mxu0 0.0
    %471 = vmatmul.mubr.f32.gmra.mxu0 %v351
    %v472 = vpop.f32.mrf.mxu0
    %v473 = vadd.f32 %v335, %v472
    %v474 = vpop.f32.mrf.mxu0
    %475 = vmatprep.mubr.f32.mxu0 0.0
    %476 = vmatmul.mubr.f32.gmra.mxu0 %v354
    %v477 = vpop.f32.mrf.mxu0
    %v478 = vadd.f32 %v335, %v477
    %v479 = vpop.f32.mrf.mxu0
    %480 = vmatprep.mubr.f32.mxu0 0.0
    %481 = vmatmul.mubr.f32.gmra.mxu0 %v357
    %v482 = vpop.f32.mrf.mxu0
    %v483 = vadd.f32 %v335, %v482
    %v484 = vpop.f32.mrf.mxu0
    %485 = vmatprep.mubr.f32.mxu0 0.0
    %486 = vmatmul.mubr.f32.gmra.mxu0 %v360
    %v487 = vpop.f32.mrf.mxu0
    %v488 = vadd.f32 %v335, %v487
    %v489 = vpop.f32.mrf.mxu0
    %490 = vmatprep.mubr.f32.mxu0 0.0
    %491 = vmatmul.mubr.f32.gmra.mxu0 %v363
    %v492 = vpop.f32.mrf.mxu0
    %v493 = vadd.f32 %v335, %v492
    %v494 = vpop.f32.mrf.mxu0
    %495 = vmatprep.mubr.f32.mxu0 0.0
    %496 = vmatmul.mubr.f32.gmra.mxu0 %v366
    %v497 = vpop.f32.mrf.mxu0
    %v498 = vadd.f32 %v335, %v497
    %v499 = vpop.f32.mrf.mxu0
    %500 = vmatprep.mubr.f32.mxu0 0.0
    %501 = vmatmul.mubr.f32.gmra.mxu0 %v369
    %v502 = vpop.f32.mrf.mxu0
    %v503 = vadd.f32 %v335, %v502
    %v504 = vpop.f32.mrf.mxu0
    %505 = vmatprep.mubr.f32.mxu0 0.0
    %506 = vmatmul.mubr.f32.gmra.mxu0 %v372
    %v507 = vpop.f32.mrf.mxu0
    %v508 = vadd.f32 %v335, %v507
    %v509 = vpop.f32.mrf.mxu0
    %510 = vmatprep.mubr.f32.mxu0 0.0
    %511 = vmatmul.mubr.f32.gmra.mxu0 %v375
    %v512 = vpop.f32.mrf.mxu0
    %v513 = vadd.f32 %v335, %v512
    %v514 = vpop.f32.mrf.mxu0
    %515 = vmatprep.mubr.f32.mxu0 0.0
    %516 = vmatmul.mubr.f32.gmra.mxu0 %v378
    %v517 = vpop.f32.mrf.mxu0
    %v518 = vadd.f32 %v335, %v517
    %v519 = vpop.f32.mrf.mxu0
    %520 = vmatprep.mubr.f32.mxu0 0.0
    %521 = vmatmul.mubr.f32.gmra.mxu0 %v381
    %v522 = vpop.f32.mrf.mxu0
    %v523 = vadd.f32 %v335, %v522
    %v524 = vpop.f32.mrf.mxu0
    %525 = vmatprep.mubr.f32.mxu0 0.0
    %526 = vmatmul.mubr.f32.gmra.mxu0 %v384
    %v527 = vpop.f32.mrf.mxu0
    %v528 = vadd.f32 %v335, %v527
    %v529 = vpop.f32.mrf.mxu0
    %530 = vdwg.mxu0
    %v531 = vmax.f32 %v453, 0.0
    %v532 = vmax.f32 %v458, 0.0
    %v533 = vmax.f32 %v463, 0.0
    %v534 = vmax.f32 %v468, 0.0
    %v535 = vmax.f32 %v473, 0.0
    %v536 = vmax.f32 %v478, 0.0
    %v537 = vmax.f32 %v483, 0.0
    %v538 = vmax.f32 %v488, 0.0
    %v539 = vmax.f32 %v493, 0.0
    %v540 = vmax.f32 %v498, 0.0
    %v541 = vmax.f32 %v503, 0.0
    %v542 = vmax.f32 %v508, 0.0
    %v543 = vmax.f32 %v513, 0.0
    %v544 = vmax.f32 %v518, 0.0
    %v545 = vmax.f32 %v523, 0.0
    %v546 = vmax.f32 %v528, 0.0
    %v547 = vld [vmem:[#allocation8] sm:$0xf]
    %548 = vmatprep.subr.mxu0 0.0
    %549 = vmatpush1.msra.mxu0 %v546
    %550 = vmatprep.subr.mxu0 0.0
    %551 = vmatpush1.msra.mxu0 %v545
    %552 = vmatprep.subr.mxu0 0.0
    %553 = vmatpush1.msra.mxu0 %v544
    %554 = vmatprep.subr.mxu0 0.0
    %555 = vmatpush1.msra.mxu0 %v543
    %556 = vmatprep.subr.mxu0 0.0
    %557 = vmatpush1.msra.mxu0 %v542
    %558 = vmatprep.subr.mxu0 0.0
    %559 = vmatpush1.msra.mxu0 %v541
    %560 = vmatprep.subr.mxu0 0.0
    %561 = vmatpush1.msra.mxu0 %v540
    %562 = vmatprep.subr.mxu0 0.0
    %563 = vmatpush1.msra.mxu0 %v539
    %564 = vmatprep.subr.mxu0 0.0
    %565 = vmatpush1.msra.mxu0 %v538
    %566 = vmatprep.subr.mxu0 0.0
    %567 = vmatpush1.msra.mxu0 %v537
    %568 = vmatprep.subr.mxu0 0.0
    %569 = vmatpush1.msra.mxu0 %v536
    %570 = vmatprep.subr.mxu0 0.0
    %571 = vmatpush1.msra.mxu0 %v535
    %572 = vmatprep.subr.mxu0 0.0
    %573 = vmatpush1.msra.mxu0 %v534
    %574 = vmatprep.subr.mxu0 0.0
    %575 = vmatpush1.msra.mxu0 %v533
    %576 = vmatprep.subr.mxu0 0.0
    %577 = vmatpush1.msra.mxu0 %v532
    %578 = vmatprep.subr.mxu0 0.0
    %579 = vmatpush1.msra.mxu0 %v531
    %580 = vmatprep.subr.mxu0 0.0
    %581 = vmatpush2.msra.mxu0 0.0
    %582 = vmatprep.subr.mxu0 0.0
    %583 = vmatpush2.msra.mxu0 0.0
    %584 = vmatprep.subr.mxu0 0.0
    %585 = vmatpush2.msra.mxu0 0.0
    %586 = vmatprep.subr.mxu0 0.0
    %587 = vmatpush2.msra.mxu0 0.0
    %588 = vmatprep.subr.mxu0 0.0
    %589 = vmatpush2.msra.mxu0 0.0
    %590 = vmatprep.subr.mxu0 0.0
    %591 = vmatpush2.msra.mxu0 0.0
    %592 = vmatprep.subr.mxu0 0.0
    %593 = vmatpush2.msra.mxu0 0.0
    %594 = vmatprep.subr.mxu0 0.0
    %595 = vmatpush2.msra.mxu0 0.0
    %596 = vmatprep.subr.mxu0 0.0
    %597 = vmatpush2.msra.mxu0 0.0
    %598 = vmatprep.subr.mxu0 0.0
    %599 = vmatpush2.msra.mxu0 0.0
    %600 = vmatprep.subr.mxu0 0.0
    %601 = vmatpush2.msra.mxu0 0.0
    %602 = vmatprep.subr.mxu0 0.0
    %603 = vmatpush2.msra.mxu0 0.0
    %604 = vmatprep.subr.mxu0 0.0
    %605 = vmatpush2.msra.mxu0 0.0
    %606 = vmatprep.subr.mxu0 0.0
    %607 = vmatpush2.msra.mxu0 0.0
    %608 = vmatprep.subr.mxu0 0.0
    %609 = vmatpush2.msra.mxu0 0.0
    %610 = vmatprep.subr.mxu0 0.0
    %611 = vmatpush2.msra.mxu0 0.0
    %612 = vmatprep.mubr.f32.mxu0 0.0
    %613 = vmatmul.mubr.f32.gmra.mxu0 %v75
    %v614 = vpop.f32.mrf.mxu0
    %v615 = vadd.f32 0.0, %v614
    %v616 = vpop.f32.mrf.mxu0
    %617 = vdwg.mxu0
    %v618 = vadd.f32 %v547, %v615
    %vm619 = vcmask 257024
    %620 = vst.msk [vmem:[#allocation8] sm:$0xf] %vm619, %v618
    %v621 = vld [vmem:[%s6] sm:$0xf]
    %vm622 = vcmask 1043456
    %v623 = vsel %vm622, %v75, 0.0
    %624 = vadd.xlane.f32.xlu0 %v623
    %v625 = vpop.xlane.xlu0 %624
    %v626 = vadd.f32 %v621, %v625
    %vm627 = vcmask 3072
    %628 = vst.msk [vmem:[%s6] sm:$0xf] %vm627, %v626
    // Predicated region
    $region38: #{tpu_custom_call.1} parent=1 // pred_check
      _
    $region39: #{tpu_custom_call.1} parent=1 // pred_check_branch
      %630 = sbr.rel (0) target = $region41
    $region40: #{tpu_custom_call.1} parent=1 // pred_region
      %s632 = ssub.s32 64, 64
      %633 = vsyncadd [#allocation4], %s632
      %s635 = sshll.u32 [#allocation8], 4
      %s636 = int_to_ptr.vmem [resolvable:$true] %s635
      %638 = dma.vmem_to_hbm [thread:$0]  %s636, 64, %s5, [#allocation4]
    $region41: #{tpu_custom_call.1} parent=1 // pred_fallthru
      _
    // Predicated region
    $region42: #{tpu_custom_call.1} parent=1 // pred_check
      _
    $region43: #{tpu_custom_call.1} parent=1 // pred_check_branch
      %640 = sbr.rel (0) target = $region45
    $region44: #{tpu_custom_call.1} parent=1 // pred_region
      _
    $region45: #{tpu_custom_call.1} parent=1 // pred_fallthru
      _
    // Predicated region
    $region46: #{tpu_custom_call.1} parent=1 // pred_check
      _
    $region47: #{tpu_custom_call.1} parent=1 // pred_check_branch
      %642 = sbr.rel (0) target = $region49
    $region48: #{tpu_custom_call.1} parent=1 // pred_region
      %643 = dma.done [#allocation4], 64
    $region49: #{tpu_custom_call.1} parent=1 // pred_fallthru
      _
    // Predicated region
    $region50: #{tpu_custom_call.1} parent=1 // pred_check
      _
    $region51: #{tpu_custom_call.1} parent=1 // pred_check_branch
      %645 = sbr.rel (0) target = $region53
    $region52: #{tpu_custom_call.1} parent=1 // pred_region
      _
    $region53: #{tpu_custom_call.1} parent=1 // pred_fallthru
      _
    %646 = vsyncpa [#allocation3], 1
    %647 = vsyncpa [#allocation6], 1
    %648 = vsyncpa [#allocation4], 1

</llo_original>
